<compile_context>
chip_gen: v7x
topology: tpu7x:2x2x1
jax: 0.10.0
libtpu: 0.0.40
codegen_flags: <defaults>
</compile_context>

<pallas_src>
import functools

import jax
import jax.numpy as jnp
import numpy as np
from jax.experimental import pallas as pl
from jax.experimental.pallas import tpu as pltpu


def pinn_kernel(x_ref, w_in_ref, b_in_ref, w_mid_ref, b_mid_ref,
                w_out_ref, b_out_ref, o_ref, *, num_middle, compute_dtype):
    cd = compute_dtype
    x = x_ref[...]                                               # (1, M) f32

    # layer_in: K=1 contraction -> broadcast outer product on the VPU.
    # FMA in f32 (consistent with the f32 MXU accumulation below); cast only
    # at the tanh so v6e/v7x take the bf16 EUP path when cd == bfloat16.
    z = w_in_ref[...] * x + b_in_ref[...]                        # (H, M) f32
    h = jnp.tanh(z.astype(cd))

    # Middle layers (statically unrolled; num_middle is small & known at
    # trace time).  w_mid is already in the compute dtype (pre-cast in the
    # wrapper); accumulation and bias add stay in f32.
    for l in range(num_middle):
        z = jnp.dot(w_mid_ref[l], h,
                    preferred_element_type=jnp.float32) + b_mid_ref[l]
        h = jnp.tanh(z.astype(cd))                               # (H, M)

    # layer_out (no activation); the (2, M) store is lane-dense along M.
    o_ref[...] = (jnp.dot(w_out_ref[...], h,
                          preferred_element_type=jnp.float32)
                  + b_out_ref[...]).astype(o_ref.dtype)


def _pick_block_rows(N, requested):
    """Largest multiple of 128 that divides N, is <= requested, and (when N
    allows it) leaves >= 2 grid steps so v7x's two TensorCores both get work."""
    if N <= 128 or N % 128 != 0:
        return N                                  # single full-coverage step
    half = (N // 2) // 128 * 128                  # guarantees >= 2 steps
    target = max(128, min(requested, half))
    br = (target // 128) * 128
    while br > 128 and N % br != 0:
        br -= 128
    return br if (br >= 128 and N % br == 0) else N


def pinn_forward(x, params, *, block_rows=4096, compute_dtype=jnp.float32):
    """x: (N, 1) float32. Returns (N, 2) float32.

    compute_dtype=jnp.bfloat16 is recommended on v6e/v7x (bf16 EUP tanh is the
    binding unit); keep float32 on v5e or when strict numerics are required.
    """
    w_in, b_in, w_mid, b_mid, w_out, b_out = params
    N = x.shape[0]
    H = w_in.shape[0]
    L = w_mid.shape[0]

    br = _pick_block_rows(N, block_rows)
    assert N % br == 0, (N, br)
    assert br % 128 == 0 or br == N, (N, br)

    x_t = x.reshape(1, N)                          # batch on lanes, no transpose op

    # Pre-cast the MXU weights once here; constant-index blocks stay resident
    # in VMEM, so an in-kernel .astype would re-run on the VPU every grid step.
    w_mid_c = w_mid.astype(compute_dtype)
    w_out_c = w_out.astype(compute_dtype)

    kernel = functools.partial(pinn_kernel, num_middle=L,
                               compute_dtype=compute_dtype)

    out_t = pl.pallas_call(
        kernel,
        out_shape=jax.ShapeDtypeStruct((2, N), jnp.float32),
        grid_spec=pltpu.PrefetchScalarGridSpec(
            num_scalar_prefetch=0,
            grid=(N // br,),
            in_specs=[
                pl.BlockSpec((1, br), lambda i: (0, i)),         # x tile (lane-dense)
                pl.BlockSpec((H, 1), lambda i: (0, 0)),          # w_in  (out, in)  f32
                pl.BlockSpec((H, 1), lambda i: (0, 0)),          # b_in  (out, 1)   f32
                pl.BlockSpec((L, H, H), lambda i: (0, 0, 0)),    # stacked mid W (cd)
                pl.BlockSpec((L, H, 1), lambda i: (0, 0, 0)),    # stacked mid b (f32)
                pl.BlockSpec((2, H), lambda i: (0, 0)),          # w_out (cd)
                pl.BlockSpec((2, 1), lambda i: (0, 0)),          # b_out (f32)
            ],
            out_specs=pl.BlockSpec((2, br), lambda i: (0, i)),
        ),
        compiler_params=pltpu.CompilerParams(
            dimension_semantics=("parallel",),     # >=2 steps -> both v7x TCs
        ),
    )(x_t, w_in, b_in, w_mid_c, b_mid, w_out_c, b_out)

    return out_t.T                                               # (N, 2)


def init_params(key, num_hidden, dim_hidden):
    """Deterministic synthetic parameters matching PINN(num_hidden, dim_hidden).

    Weights in PyTorch's native (out_features, in_features) layout; biases as
    (out_features, 1) column vectors.
    """
    num_middle = num_hidden - 1
    ks = jax.random.split(key, 6)
    scale = 0.5
    w_in = scale * jax.random.normal(ks[0], (dim_hidden, 1), jnp.float32)
    b_in = scale * jax.random.normal(ks[1], (dim_hidden, 1), jnp.float32)
    w_mid = scale * jax.random.normal(
        ks[2], (num_middle, dim_hidden, dim_hidden), jnp.float32) / np.sqrt(dim_hidden)
    b_mid = scale * jax.random.normal(
        ks[3], (num_middle, dim_hidden, 1), jnp.float32)
    w_out = scale * jax.random.normal(
        ks[4], (2, dim_hidden), jnp.float32) / np.sqrt(dim_hidden)
    b_out = scale * jax.random.normal(ks[5], (2, 1), jnp.float32)
    return (w_in, b_in, w_mid, b_mid, w_out, b_out)


def pinn_reference(x, params):
    """Pure-JAX reference mirroring the PyTorch forward (x: (N,1) -> (N,2))."""
    w_in, b_in, w_mid, b_mid, w_out, b_out = params
    h = jnp.tanh(x @ w_in.T + b_in.T)
    for l in range(w_mid.shape[0]):
        h = jnp.tanh(h @ w_mid[l].T + b_mid[l].T)
    return h @ w_out.T + b_out.T


if __name__ == "__main__":
    num_hidden = 3      # -> 2 middle layers
    dim_hidden = 32
    N = 256             # collocation points; auto-split into 2 parallel steps of 128

    key = jax.random.PRNGKey(0)
    k_x, k_p = jax.random.split(key)
    x = jax.random.uniform(k_x, (N, 1), jnp.float32)   # time points t in [0, 1)
    params = init_params(k_p, num_hidden, dim_hidden)

    ref = pinn_reference(x, params)

    # f32 path (v5e / strict numerics): exact-ish check against the reference.
    out = jax.block_until_ready(pinn_forward(x, params))
    assert out.shape == (N, 2), out.shape
    np.testing.assert_allclose(np.asarray(out), np.asarray(ref),
                               rtol=1e-5, atol=1e-5)

    # bf16 compute path (recommended on v6e/v7x: bf16 EUP tanh + bf16 MXU,
    # f32 accumulation / bias adds): loose tolerance.
    out_bf16 = jax.block_until_ready(
        pinn_forward(x, params, compute_dtype=jnp.bfloat16))
    np.testing.assert_allclose(np.asarray(out_bf16), np.asarray(ref),
                               rtol=5e-2, atol=5e-2)

    print("KERNEL_OK")
</pallas_src>

<mosaic_0001>
module attributes {stable_mosaic.version = 11 : i64} {
  func.func @pinn_kernel(%arg0: i32, %arg1: memref<1x128xf32, #tpu.memory_space<vmem>>, %arg2: memref<32x1xf32, #tpu.memory_space<vmem>>, %arg3: memref<32x1xf32, #tpu.memory_space<vmem>>, %arg4: memref<2x32x32xf32, #tpu.memory_space<vmem>>, %arg5: memref<2x32x1xf32, #tpu.memory_space<vmem>>, %arg6: memref<2x32xf32, #tpu.memory_space<vmem>>, %arg7: memref<2x1xf32, #tpu.memory_space<vmem>>, %arg8: memref<2x128xf32, #tpu.memory_space<vmem>>) attributes {dimension_semantics = [#tpu.dimension_semantics<parallel>], iteration_bounds = array<i64: 2>, scalar_prefetch = 0 : i64, scratch_operands = 0 : i64, tpu.core_type = #tpu.core_type<tc>, window_params = [{transform_indices = @transform_0, window_bounds = array<i64: 1, 128>}, {pipeline_mode = #tpu.pipeline_mode<synchronous>, transform_indices = @transform_1, window_bounds = array<i64: 32, 1>}, {pipeline_mode = #tpu.pipeline_mode<synchronous>, transform_indices = @transform_2, window_bounds = array<i64: 32, 1>}, {pipeline_mode = #tpu.pipeline_mode<synchronous>, transform_indices = @transform_3, window_bounds = array<i64: 2, 32, 32>}, {pipeline_mode = #tpu.pipeline_mode<synchronous>, transform_indices = @transform_4, window_bounds = array<i64: 2, 32, 1>}, {pipeline_mode = #tpu.pipeline_mode<synchronous>, transform_indices = @transform_5, window_bounds = array<i64: 2, 32>}, {pipeline_mode = #tpu.pipeline_mode<synchronous>, transform_indices = @transform_6, window_bounds = array<i64: 2, 1>}, {transform_indices = @transform_7, window_bounds = array<i64: 2, 128>}]} {
    %c0 = arith.constant 0 : index
    %c0_0 = arith.constant 0 : index
    %0 = vector.load %arg1[%c0, %c0_0] : memref<1x128xf32, #tpu.memory_space<vmem>>, vector<1x128xf32>
    %c0_1 = arith.constant 0 : index
    %c0_2 = arith.constant 0 : index
    %1 = vector.load %arg2[%c0_1, %c0_2] : memref<32x1xf32, #tpu.memory_space<vmem>>, vector<32x1xf32>
    %2 = vector.broadcast %1 : vector<32x1xf32> to vector<32x128xf32>
    %3 = vector.broadcast %0 : vector<1x128xf32> to vector<32x128xf32>
    %4 = arith.mulf %2, %3 : vector<32x128xf32>
    %c0_3 = arith.constant 0 : index
    %c0_4 = arith.constant 0 : index
    %5 = vector.load %arg3[%c0_3, %c0_4] : memref<32x1xf32, #tpu.memory_space<vmem>>, vector<32x1xf32>
    %6 = vector.broadcast %5 : vector<32x1xf32> to vector<32x128xf32>
    %7 = arith.addf %4, %6 : vector<32x128xf32>
    %8 = math.tanh %7 : vector<32x128xf32>
    %c0_5 = arith.constant 0 : index
    %c0_6 = arith.constant 0 : index
    %c0_7 = arith.constant 0 : index
    %9 = vector.load %arg4[%c0_5, %c0_6, %c0_7] : memref<2x32x32xf32, #tpu.memory_space<vmem>>, vector<1x32x32xf32>
    %10 = vector.shape_cast %9 : vector<1x32x32xf32> to vector<32x32xf32>
    %cst = arith.constant dense<0.000000e+00> : vector<32x128xf32>
    %11 = tpu.matmul %10, %8, %cst {dimension_numbers = #tpu.dot_dimension_numbers<[1], [0], [0], [1], [0, 0, 1, 1], [], []>} : vector<32x32xf32>, vector<32x128xf32>, vector<32x128xf32> -> vector<32x128xf32>
    %c0_8 = arith.constant 0 : index
    %c0_9 = arith.constant 0 : index
    %c0_10 = arith.constant 0 : index
    %12 = vector.load %arg5[%c0_8, %c0_9, %c0_10] : memref<2x32x1xf32, #tpu.memory_space<vmem>>, vector<1x32x1xf32>
    %13 = vector.shape_cast %12 : vector<1x32x1xf32> to vector<32x1xf32>
    %14 = vector.broadcast %13 : vector<32x1xf32> to vector<32x128xf32>
    %15 = arith.addf %11, %14 : vector<32x128xf32>
    %16 = math.tanh %15 : vector<32x128xf32>
    %c1 = arith.constant 1 : index
    %c0_11 = arith.constant 0 : index
    %c0_12 = arith.constant 0 : index
    %17 = vector.load %arg4[%c1, %c0_11, %c0_12] : memref<2x32x32xf32, #tpu.memory_space<vmem>>, vector<1x32x32xf32>
    %18 = vector.shape_cast %17 : vector<1x32x32xf32> to vector<32x32xf32>
    %cst_13 = arith.constant dense<0.000000e+00> : vector<32x128xf32>
    %19 = tpu.matmul %18, %16, %cst_13 {dimension_numbers = #tpu.dot_dimension_numbers<[1], [0], [0], [1], [0, 0, 1, 1], [], []>} : vector<32x32xf32>, vector<32x128xf32>, vector<32x128xf32> -> vector<32x128xf32>
    %c1_14 = arith.constant 1 : index
    %c0_15 = arith.constant 0 : index
    %c0_16 = arith.constant 0 : index
    %20 = vector.load %arg5[%c1_14, %c0_15, %c0_16] : memref<2x32x1xf32, #tpu.memory_space<vmem>>, vector<1x32x1xf32>
    %21 = vector.shape_cast %20 : vector<1x32x1xf32> to vector<32x1xf32>
    %22 = vector.broadcast %21 : vector<32x1xf32> to vector<32x128xf32>
    %23 = arith.addf %19, %22 : vector<32x128xf32>
    %24 = math.tanh %23 : vector<32x128xf32>
    %c0_17 = arith.constant 0 : index
    %c0_18 = arith.constant 0 : index
    %25 = vector.load %arg6[%c0_17, %c0_18] : memref<2x32xf32, #tpu.memory_space<vmem>>, vector<2x32xf32>
    %cst_19 = arith.constant dense<0.000000e+00> : vector<2x128xf32>
    %26 = tpu.matmul %25, %24, %cst_19 {dimension_numbers = #tpu.dot_dimension_numbers<[1], [0], [0], [1], [0, 0, 1, 1], [], []>} : vector<2x32xf32>, vector<32x128xf32>, vector<2x128xf32> -> vector<2x128xf32>
    %c0_20 = arith.constant 0 : index
    %c0_21 = arith.constant 0 : index
    %27 = vector.load %arg7[%c0_20, %c0_21] : memref<2x1xf32, #tpu.memory_space<vmem>>, vector<2x1xf32>
    %28 = vector.broadcast %27 : vector<2x1xf32> to vector<2x128xf32>
    %29 = arith.addf %26, %28 : vector<2x128xf32>
    %c0_22 = arith.constant 0 : index
    %c0_23 = arith.constant 0 : index
    %30 = vector.load %arg8[%c0_22, %c0_23] : memref<2x128xf32, #tpu.memory_space<vmem>>, vector<2x128xf32>
    tpu.vector_store %arg8[%c0_22, %c0_23], %29 {strides = array<i32>} : memref<2x128xf32, #tpu.memory_space<vmem>>, vector<2x128xf32>,
    return
  }
  func.func @transform_0(%arg0: i32) -> (i32, i32) {
    %c0_i32 = arith.constant 0 : i32
    %c0_i32_0 = arith.constant 0 : i32
    return %c0_i32, %arg0 : i32, i32
  }
  func.func @transform_1(%arg0: i32) -> (i32, i32) {
    %c0_i32 = arith.constant 0 : i32
    %c0_i32_0 = arith.constant 0 : i32
    %c0_i32_1 = arith.constant 0 : i32
    return %c0_i32, %c0_i32_0 : i32, i32
  }
  func.func @transform_2(%arg0: i32) -> (i32, i32) {
    %c0_i32 = arith.constant 0 : i32
    %c0_i32_0 = arith.constant 0 : i32
    %c0_i32_1 = arith.constant 0 : i32
    return %c0_i32, %c0_i32_0 : i32, i32
  }
  func.func @transform_3(%arg0: i32) -> (i32, i32, i32) {
    %c0_i32 = arith.constant 0 : i32
    %c0_i32_0 = arith.constant 0 : i32
    %c0_i32_1 = arith.constant 0 : i32
    %c0_i32_2 = arith.constant 0 : i32
    return %c0_i32, %c0_i32_0, %c0_i32_1 : i32, i32, i32
  }
  func.func @transform_4(%arg0: i32) -> (i32, i32, i32) {
    %c0_i32 = arith.constant 0 : i32
    %c0_i32_0 = arith.constant 0 : i32
    %c0_i32_1 = arith.constant 0 : i32
    %c0_i32_2 = arith.constant 0 : i32
    return %c0_i32, %c0_i32_0, %c0_i32_1 : i32, i32, i32
  }
  func.func @transform_5(%arg0: i32) -> (i32, i32) {
    %c0_i32 = arith.constant 0 : i32
    %c0_i32_0 = arith.constant 0 : i32
    %c0_i32_1 = arith.constant 0 : i32
    return %c0_i32, %c0_i32_0 : i32, i32
  }
  func.func @transform_6(%arg0: i32) -> (i32, i32) {
    %c0_i32 = arith.constant 0 : i32
    %c0_i32_0 = arith.constant 0 : i32
    %c0_i32_1 = arith.constant 0 : i32
    return %c0_i32, %c0_i32_0 : i32, i32
  }
  func.func @transform_7(%arg0: i32) -> (i32, i32) {
    %c0_i32 = arith.constant 0 : i32
    %c0_i32_0 = arith.constant 0 : i32
    return %c0_i32, %arg0 : i32, i32
  }
}

</mosaic_0001>

<llo_original>
// kernel: tpu_custom_call.1
$region0: #{tpu_custom_call.1}
  #allocation0 [shape = 'u32[]', space=smem, size = 0x4, offset = 0x4, fixed_abs, tag = 'smem constant byte address 0x4 - core index']
  #allocation1 [shape = 'u32[144,128]{1,0:T(1,128)}', space=vmem, size = 0x12000, scoped, tag = 'internal scratch']
  %s0 = inlined_call_operand.vmem [shape: f32[1,256], index: 0, kind: input, shape index: {}]
  %s1 = inlined_call_operand.vmem [shape: f32[32,1], index: 1, kind: input, shape index: {}]
  %s2 = inlined_call_operand.vmem [shape: f32[32,1], index: 2, kind: input, shape index: {}]
  %s3 = inlined_call_operand.vmem [shape: f32[2,32,32], index: 3, kind: input, shape index: {}]
  %s4 = inlined_call_operand.vmem [shape: f32[2,32,1], index: 4, kind: input, shape index: {}]
  %s5 = inlined_call_operand.vmem [shape: f32[2,32], index: 5, kind: input, shape index: {}]
  %s6 = inlined_call_operand.vmem [shape: f32[2,1], index: 6, kind: input, shape index: {}]
  %s7 = inlined_call_operand.hbm [shape: f32[2,256], index: 7, kind: output, shape index: {}]
  %s8 = sld [smem:[#allocation0]]
  $region61: #{tpu_custom_call.1} parent=0
    _
  %s10 = ssub.s32 1, %s8
  %s11 = scalar_select 0, %s10, %s8
  $region1: #{tpu_custom_call.1} parent=0
    #allocation2 [shape = 'u8[2048]{0}', space=vmem, size = 0x800, scoped, tag = 'output window, operand 0']
    #allocation3 [shape = 's32[2]{0}', space=sflag, size = 0x8, scoped, tag = 'scoped memory for tpu_custom_call.1']
    %12 = vsyncpa [#allocation3], 0
    %s13 = scalar_lea.sflag [#allocation3], 1
    %14 = vsyncpa %s13, 0
    loop: start=0, step=1, limit=4
    $region2: #{tpu_custom_call.1} parent=1 // loop_pre_header
      _
    $region3: #{tpu_custom_call.1} parent=1 // loop_header
      %s16 = sphi 0, %s20
      %p17 = scmp.ge.s32.totalorder %s16, 4
      %s26 = sphi 0, %s28
      %s29 = sphi 0, %s26
      %s30 = sphi 0, %s29
      %s46 = sphi 0, %s30
      %s50 = sphi 0, %s50
      %s52 = sphi 0, %s50
      %s53 = sphi 0, %s52
      %s67 = sphi 0, %s53
      %s71 = sphi 0, %s71
      %s73 = sphi 0, %s71
      %s74 = sphi 0, %s73
      %s88 = sphi 0, %s74
      %s92 = sphi 0, %s92
      %s94 = sphi 0, %s92
      %s95 = sphi 0, %s94
      %s109 = sphi 0, %s95
      %s113 = sphi 0, %s113
      %s115 = sphi 0, %s113
      %s116 = sphi 0, %s115
      %s130 = sphi 0, %s116
      %s134 = sphi 0, %s134
      %s136 = sphi 0, %s134
      %s137 = sphi 0, %s136
      %s151 = sphi 0, %s137
      %s155 = sphi 0, %s155
      %s157 = sphi 0, %s155
      %s158 = sphi 0, %s157
      %s172 = sphi 0, %s158
      %s178 = sphi 0, %s180
      %s181 = sphi 0, %s178
      %s182 = sphi 0, %s181
      %s198 = sphi 0, %s182
    $region4: #{tpu_custom_call.1} parent=1 // loop_header_branch
      %19 = sbr.rel (%p17) target = $region8
    $region5: #{tpu_custom_call.1} parent=1 // loop_body
      %s21 = ssub.s32 %s16, 1
      %s22 = ssub.s32 %s16, 2
      %s23 = sadd.s32 %s16, 1
      %s24 = ssub.s32 %s16, %s23
      %p25 = scmp.eq.s32.totalorder %s24, 0
      %s27 = sadd.s32 %s26, 1
      %s28 = scalar_select %p25, %s26, %s27
      %p31 = pneg %p25
      %p32 = scmp.eq.s32.totalorder %s16, 1
      %p33 = por %p31, %p32
      %p34 = scmp.ne.s32.totalorder %s26, %s29
      %p35 = scmp.eq.s32.totalorder %s16, 0
      %p36 = por %p34, %p35
      %p37 = scmp.ne.s32.totalorder %s26, %s29
      %p38 = scmp.eq.s32.totalorder %s21, 1
      %p39 = por %p37, %p38
      %p40 = scmp.ne.s32.totalorder %s29, %s30
      %p41 = scmp.eq.s32.totalorder %s21, 0
      %p42 = por %p40, %p41
      %p43 = scmp.ne.s32.totalorder %s29, %s30
      %p44 = scmp.eq.s32.totalorder %s22, 1
      %p45 = por %p43, %p44
      %p47 = scmp.ne.s32.totalorder %s30, %s46
      %p48 = scmp.eq.s32.totalorder %s22, 0
      %p49 = por %p47, %p48
      %s51 = sadd.s32 %s50, 1
      %p54 = scmp.eq.s32.totalorder %s16, 1
      %p55 = scmp.ne.s32.totalorder %s50, %s52
      %p56 = scmp.eq.s32.totalorder %s16, 0
      %p57 = por %p55, %p56
      %p58 = scmp.ne.s32.totalorder %s50, %s52
      %p59 = scmp.eq.s32.totalorder %s21, 1
      %p60 = por %p58, %p59
      %p61 = scmp.ne.s32.totalorder %s52, %s53
      %p62 = scmp.eq.s32.totalorder %s21, 0
      %p63 = por %p61, %p62
      %p64 = scmp.ne.s32.totalorder %s52, %s53
      %p65 = scmp.eq.s32.totalorder %s22, 1
      %p66 = por %p64, %p65
      %p68 = scmp.ne.s32.totalorder %s53, %s67
      %p69 = scmp.eq.s32.totalorder %s22, 0
      %p70 = por %p68, %p69
      %s72 = sadd.s32 %s71, 1
      %p75 = scmp.eq.s32.totalorder %s16, 1
      %p76 = scmp.ne.s32.totalorder %s71, %s73
      %p77 = scmp.eq.s32.totalorder %s16, 0
      %p78 = por %p76, %p77
      %p79 = scmp.ne.s32.totalorder %s71, %s73
      %p80 = scmp.eq.s32.totalorder %s21, 1
      %p81 = por %p79, %p80
      %p82 = scmp.ne.s32.totalorder %s73, %s74
      %p83 = scmp.eq.s32.totalorder %s21, 0
      %p84 = por %p82, %p83
      %p85 = scmp.ne.s32.totalorder %s73, %s74
      %p86 = scmp.eq.s32.totalorder %s22, 1
      %p87 = por %p85, %p86
      %p89 = scmp.ne.s32.totalorder %s74, %s88
      %p90 = scmp.eq.s32.totalorder %s22, 0
      %p91 = por %p89, %p90
      %s93 = sadd.s32 %s92, 1
      %p96 = scmp.eq.s32.totalorder %s16, 1
      %p97 = scmp.ne.s32.totalorder %s92, %s94
      %p98 = scmp.eq.s32.totalorder %s16, 0
      %p99 = por %p97, %p98
      %p100 = scmp.ne.s32.totalorder %s92, %s94
      %p101 = scmp.eq.s32.totalorder %s21, 1
      %p102 = por %p100, %p101
      %p103 = scmp.ne.s32.totalorder %s94, %s95
      %p104 = scmp.eq.s32.totalorder %s21, 0
      %p105 = por %p103, %p104
      %p106 = scmp.ne.s32.totalorder %s94, %s95
      %p107 = scmp.eq.s32.totalorder %s22, 1
      %p108 = por %p106, %p107
      %p110 = scmp.ne.s32.totalorder %s95, %s109
      %p111 = scmp.eq.s32.totalorder %s22, 0
      %p112 = por %p110, %p111
      %s114 = sadd.s32 %s113, 1
      %p117 = scmp.eq.s32.totalorder %s16, 1
      %p118 = scmp.ne.s32.totalorder %s113, %s115
      %p119 = scmp.eq.s32.totalorder %s16, 0
      %p120 = por %p118, %p119
      %p121 = scmp.ne.s32.totalorder %s113, %s115
      %p122 = scmp.eq.s32.totalorder %s21, 1
      %p123 = por %p121, %p122
      %p124 = scmp.ne.s32.totalorder %s115, %s116
      %p125 = scmp.eq.s32.totalorder %s21, 0
      %p126 = por %p124, %p125
      %p127 = scmp.ne.s32.totalorder %s115, %s116
      %p128 = scmp.eq.s32.totalorder %s22, 1
      %p129 = por %p127, %p128
      %p131 = scmp.ne.s32.totalorder %s116, %s130
      %p132 = scmp.eq.s32.totalorder %s22, 0
      %p133 = por %p131, %p132
      %s135 = sadd.s32 %s134, 1
      %p138 = scmp.eq.s32.totalorder %s16, 1
      %p139 = scmp.ne.s32.totalorder %s134, %s136
      %p140 = scmp.eq.s32.totalorder %s16, 0
      %p141 = por %p139, %p140
      %p142 = scmp.ne.s32.totalorder %s134, %s136
      %p143 = scmp.eq.s32.totalorder %s21, 1
      %p144 = por %p142, %p143
      %p145 = scmp.ne.s32.totalorder %s136, %s137
      %p146 = scmp.eq.s32.totalorder %s21, 0
      %p147 = por %p145, %p146
      %p148 = scmp.ne.s32.totalorder %s136, %s137
      %p149 = scmp.eq.s32.totalorder %s22, 1
      %p150 = por %p148, %p149
      %p152 = scmp.ne.s32.totalorder %s137, %s151
      %p153 = scmp.eq.s32.totalorder %s22, 0
      %p154 = por %p152, %p153
      %s156 = sadd.s32 %s155, 1
      %p159 = scmp.eq.s32.totalorder %s16, 1
      %p160 = scmp.ne.s32.totalorder %s155, %s157
      %p161 = scmp.eq.s32.totalorder %s16, 0
      %p162 = por %p160, %p161
      %p163 = scmp.ne.s32.totalorder %s155, %s157
      %p164 = scmp.eq.s32.totalorder %s21, 1
      %p165 = por %p163, %p164
      %p166 = scmp.ne.s32.totalorder %s157, %s158
      %p167 = scmp.eq.s32.totalorder %s21, 0
      %p168 = por %p166, %p167
      %p169 = scmp.ne.s32.totalorder %s157, %s158
      %p170 = scmp.eq.s32.totalorder %s22, 1
      %p171 = por %p169, %p170
      %p173 = scmp.ne.s32.totalorder %s158, %s172
      %p174 = scmp.eq.s32.totalorder %s22, 0
      %p175 = por %p173, %p174
      %s176 = ssub.s32 %s16, %s23
      %p177 = scmp.eq.s32.totalorder %s176, 0
      %s179 = sadd.s32 %s178, 1
      %s180 = scalar_select %p177, %s178, %s179
      %p183 = pneg %p177
      %p184 = scmp.eq.s32.totalorder %s16, 1
      %p185 = por %p183, %p184
      %p186 = scmp.ne.s32.totalorder %s178, %s181
      %p187 = scmp.eq.s32.totalorder %s16, 0
      %p188 = por %p186, %p187
      %p189 = scmp.ne.s32.totalorder %s178, %s181
      %p190 = scmp.eq.s32.totalorder %s21, 1
      %p191 = por %p189, %p190
      %p192 = scmp.ne.s32.totalorder %s181, %s182
      %p193 = scmp.eq.s32.totalorder %s21, 0
      %p194 = por %p192, %p193
      %p195 = scmp.ne.s32.totalorder %s181, %s182
      %p196 = scmp.eq.s32.totalorder %s22, 1
      %p197 = por %p195, %p196
      %p199 = scmp.ne.s32.totalorder %s182, %s198
      %p200 = scmp.eq.s32.totalorder %s22, 0
      %p201 = por %p199, %p200
      %p202 = scmp.le.s32.totalorder 1, %s16
      %p203 = scmp.lt.s32.totalorder %s16, 3
      %p204 = pnand %p202, %p203
      %p205 = pneg %p204
      // Predicated region
      $region9: #{tpu_custom_call.1} parent=5 // pred_check
        _
      $region10: #{tpu_custom_call.1} parent=5 // pred_check_branch
        %207 = sbr.rel (%p204) target = $region12
      $region11: #{tpu_custom_call.1} parent=5 // pred_region
        %s208 = ssub.s32 %s16, 1
        // Predicated region
        $region13: #{tpu_custom_call.1} parent=11 // pred_check
          %p209 = pneg %p63
        $region14: #{tpu_custom_call.1} parent=11 // pred_check_branch
          %211 = sbr.rel (%p209) target = $region16
        $region15: #{tpu_custom_call.1} parent=11 // pred_region
          _
        $region16: #{tpu_custom_call.1} parent=11 // pred_fallthru
          _
        // Predicated region
        $region17: #{tpu_custom_call.1} parent=11 // pred_check
          %p212 = pneg %p84
        $region18: #{tpu_custom_call.1} parent=11 // pred_check_branch
          %214 = sbr.rel (%p212) target = $region20
        $region19: #{tpu_custom_call.1} parent=11 // pred_region
          _
        $region20: #{tpu_custom_call.1} parent=11 // pred_fallthru
          _
        // Predicated region
        $region21: #{tpu_custom_call.1} parent=11 // pred_check
          %p215 = pneg %p105
        $region22: #{tpu_custom_call.1} parent=11 // pred_check_branch
          %217 = sbr.rel (%p215) target = $region24
        $region23: #{tpu_custom_call.1} parent=11 // pred_region
          _
        $region24: #{tpu_custom_call.1} parent=11 // pred_fallthru
          _
        // Predicated region
        $region25: #{tpu_custom_call.1} parent=11 // pred_check
          %p218 = pneg %p126
        $region26: #{tpu_custom_call.1} parent=11 // pred_check_branch
          %220 = sbr.rel (%p218) target = $region28
        $region27: #{tpu_custom_call.1} parent=11 // pred_region
          _
        $region28: #{tpu_custom_call.1} parent=11 // pred_fallthru
          _
        // Predicated region
        $region29: #{tpu_custom_call.1} parent=11 // pred_check
          %p221 = pneg %p147
        $region30: #{tpu_custom_call.1} parent=11 // pred_check_branch
          %223 = sbr.rel (%p221) target = $region32
        $region31: #{tpu_custom_call.1} parent=11 // pred_region
          _
        $region32: #{tpu_custom_call.1} parent=11 // pred_fallthru
          _
        // Predicated region
        $region33: #{tpu_custom_call.1} parent=11 // pred_check
          %p224 = pneg %p168
        $region34: #{tpu_custom_call.1} parent=11 // pred_check_branch
          %226 = sbr.rel (%p224) target = $region36
        $region35: #{tpu_custom_call.1} parent=11 // pred_region
          _
        $region36: #{tpu_custom_call.1} parent=11 // pred_fallthru
          _
      $region12: #{tpu_custom_call.1} parent=5 // pred_fallthru
        _
      %p227 = scmp.lt.s32.totalorder %s16, 2
      // Predicated region
      $region37: #{tpu_custom_call.1} parent=5 // pred_check
        %p228 = pneg %p227
      $region38: #{tpu_custom_call.1} parent=5 // pred_check_branch
        %230 = sbr.rel (%p228) target = $region40
      $region39: #{tpu_custom_call.1} parent=5 // pred_region
        // Predicated region
        $region41: #{tpu_custom_call.1} parent=39 // pred_check
          %p231 = pneg %p36
        $region42: #{tpu_custom_call.1} parent=39 // pred_check_branch
          %233 = sbr.rel (%p231) target = $region44
        $region43: #{tpu_custom_call.1} parent=39 // pred_region
          %p234 = scmp.lt.s32.totalorder %s16, 1
          %s235 = scalar_select %p234, %s16, 1
          %s236 = scalar_lea.vmem %s0, %s235
        $region44: #{tpu_custom_call.1} parent=39 // pred_fallthru
          _
      $region40: #{tpu_custom_call.1} parent=5 // pred_fallthru
        _
      %p237 = scmp.le.s32.totalorder 1, %s16
      %p238 = scmp.lt.s32.totalorder %s16, 3
      %p239 = pnand %p237, %p238
      %p240 = pneg %p239
      // Predicated region
      $region45: #{tpu_custom_call.1} parent=5 // pred_check
        _
      $region46: #{tpu_custom_call.1} parent=5 // pred_check_branch
        %242 = sbr.rel (%p239) target = $region48
      $region47: #{tpu_custom_call.1} parent=5 // pred_region
        %s243 = ssub.s32 %s16, 1
        %p244 = scmp.lt.s32.totalorder %s21, 1
        %s245 = scalar_select %p244, %s21, 1
        %s246 = scalar_lea.vmem %s0, %s245
        %p247 = pneg %p42
        %p248 = pneg %p39
        %p249 = pneg %p63
        %p250 = pneg %p60
        %p251 = pneg %p84
        %p252 = pneg %p81
        %p253 = pneg %p105
        %p254 = pneg %p102
        %p255 = pneg %p126
        %p256 = pneg %p123
        %p257 = pneg %p147
        %p258 = pneg %p144
        %p259 = pneg %p168
        %p260 = pneg %p165
        %p261 = pneg %p194
        %p262 = pneg %p191
        %s263 = sand.u32 %s181, 1
        %s264 = scalar_lea.sflag [#allocation3], %s263
        %s265 = sand.u32 %s181, 1
        %s266 = smul.addr %s265, 2
        %s267 = scalar_lea.vmem [#allocation2], %s266
        %p268 = scmp.lt.s32.totalorder %s21, 1
        %s269 = scalar_select %p268, %s21, 1
        %s270 = scalar_lea.vmem %s0, %s269
        %v271 = vld [vmem:[%s270] sm:$0x1]
        %v272 = vld [vmem:[%s1] sm:$0xff]
        %v273 = vld [vmem:[%s1 + $0x8] sm:$0xff]
        %v274 = vld [vmem:[%s1 + $0x10] sm:$0xff]
        %v275 = vld [vmem:[%s1 + $0x18] sm:$0xff]
        %277 = vset.pattern.permute.xlu0 0
        %278 = vperm.xlu0 %277, %v272
        %v279 = vpop.permute.xlu0 %278
        %282 = vset.pattern.permute.xlu0 0
        %283 = vperm.xlu0 %282, %v273
        %v284 = vpop.permute.xlu0 %283
        %287 = vset.pattern.permute.xlu0 0
        %288 = vperm.xlu0 %287, %v274
        %v289 = vpop.permute.xlu0 %288
        %292 = vset.pattern.permute.xlu0 0
        %293 = vperm.xlu0 %292, %v275
        %v294 = vpop.permute.xlu0 %293
        %v297 = vlaneseq
        %v298 = vshrl.u32 %v297, 7
        %v299 = vsub.s32 0, %v298
        %v300 = vrot.slane %v271, %v299
        %v302 = vmul.f32 %v279, %v300
        %v303 = vmul.f32 %v284, %v300
        %v304 = vmul.f32 %v289, %v300
        %v305 = vmul.f32 %v294, %v300
        %v306 = vld [vmem:[%s2] sm:$0xff]
        %v307 = vld [vmem:[%s2 + $0x8] sm:$0xff]
        %v308 = vld [vmem:[%s2 + $0x10] sm:$0xff]
        %v309 = vld [vmem:[%s2 + $0x18] sm:$0xff]
        %311 = vset.pattern.permute.xlu0 0
        %312 = vperm.xlu0 %311, %v306
        %v313 = vpop.permute.xlu0 %312
        %316 = vset.pattern.permute.xlu0 0
        %317 = vperm.xlu0 %316, %v307
        %v318 = vpop.permute.xlu0 %317
        %321 = vset.pattern.permute.xlu0 0
        %322 = vperm.xlu0 %321, %v308
        %v323 = vpop.permute.xlu0 %322
        %326 = vset.pattern.permute.xlu0 0
        %327 = vperm.xlu0 %326, %v309
        %v328 = vpop.permute.xlu0 %327
        %v330 = vadd.f32 %v302, %v313
        %v331 = vadd.f32 %v303, %v318
        %v332 = vadd.f32 %v304, %v323
        %v333 = vadd.f32 %v305, %v328
        %v334 = vtanh.pop %v330
        %v335 = vtanh.pop %v331
        %v336 = vtanh.pop %v332
        %v337 = vtanh.pop %v333
        %v338 = vld [vmem:[%s3] sm:$0xff]
        %v339 = vld [vmem:[%s3 + $0x8] sm:$0xff]
        %v340 = vld [vmem:[%s3 + $0x10] sm:$0xff]
        %v341 = vld [vmem:[%s3 + $0x18] sm:$0xff]
        %v342 = vld [vmem:[%s4] sm:$0xff]
        %v343 = vld [vmem:[%s4 + $0x8] sm:$0xff]
        %v344 = vld [vmem:[%s4 + $0x10] sm:$0xff]
        %v345 = vld [vmem:[%s4 + $0x18] sm:$0xff]
        %347 = vset.pattern.permute.xlu0 0
        %348 = vperm.xlu0 %347, %v342
        %v349 = vpop.permute.xlu0 %348
        %352 = vset.pattern.permute.xlu0 0
        %353 = vperm.xlu0 %352, %v343
        %v354 = vpop.permute.xlu0 %353
        %357 = vset.pattern.permute.xlu0 0
        %358 = vperm.xlu0 %357, %v344
        %v359 = vpop.permute.xlu0 %358
        %362 = vset.pattern.permute.xlu0 0
        %363 = vperm.xlu0 %362, %v345
        %v364 = vpop.permute.xlu0 %363
        %vm366 = vcmask 261120
        %v368 = vsel %vm366, %v338, 0
        %v371 = vsel %vm366, %v339, 0
        %v374 = vsel %vm366, %v340, 0
        %v377 = vsel %vm366, %v341, 0
        %379 = vmatprep.subr.mxu0 0.0
        %380 = vmatpush1.msra.mxu0 %v334
        %381 = vmatprep.subr.mxu0 0.0
        %382 = vmatpush1.msra.mxu0 %v335
        %383 = vmatprep.subr.mxu0 0.0
        %384 = vmatpush1.msra.mxu0 %v336
        %385 = vmatprep.subr.mxu0 0.0
        %386 = vmatpush1.msra.mxu0 %v337
        %387 = vmatprep.subr.mxu0 0.0
        %388 = vmatpush1.msra.mxu0 0.0
        %389 = vmatprep.subr.mxu0 0.0
        %390 = vmatpush1.msra.mxu0 0.0
        %391 = vmatprep.subr.mxu0 0.0
        %392 = vmatpush1.msra.mxu0 0.0
        %393 = vmatprep.subr.mxu0 0.0
        %394 = vmatpush1.msra.mxu0 0.0
        %395 = vmatprep.subr.mxu0 0.0
        %396 = vmatpush1.msra.mxu0 0.0
        %397 = vmatprep.subr.mxu0 0.0
        %398 = vmatpush1.msra.mxu0 0.0
        %399 = vmatprep.subr.mxu0 0.0
        %400 = vmatpush1.msra.mxu0 0.0
        %401 = vmatprep.subr.mxu0 0.0
        %402 = vmatpush1.msra.mxu0 0.0
        %403 = vmatprep.subr.mxu0 0.0
        %404 = vmatpush1.msra.mxu0 0.0
        %405 = vmatprep.subr.mxu0 0.0
        %406 = vmatpush1.msra.mxu0 0.0
        %407 = vmatprep.subr.mxu0 0.0
        %408 = vmatpush1.msra.mxu0 0.0
        %409 = vmatprep.subr.mxu0 0.0
        %410 = vmatpush1.msra.mxu0 0.0
        %411 = vmatprep.subr.mxu0 0.0
        %412 = vmatpush1.msra.mxu0 0.0
        %413 = vmatprep.subr.mxu0 0.0
        %414 = vmatpush1.msra.mxu0 0.0
        %415 = vmatprep.subr.mxu0 0.0
        %416 = vmatpush1.msra.mxu0 0.0
        %417 = vmatprep.subr.mxu0 0.0
        %418 = vmatpush1.msra.mxu0 0.0
        %419 = vmatprep.subr.mxu0 0.0
        %420 = vmatpush1.msra.mxu0 0.0
        %421 = vmatprep.subr.mxu0 0.0
        %422 = vmatpush1.msra.mxu0 0.0
        %423 = vmatprep.subr.mxu0 0.0
        %424 = vmatpush1.msra.mxu0 0.0
        %425 = vmatprep.subr.mxu0 0.0
        %426 = vmatpush1.msra.mxu0 0.0
        %427 = vmatprep.subr.mxu0 0.0
        %428 = vmatpush1.msra.mxu0 0.0
        %429 = vmatprep.subr.mxu0 0.0
        %430 = vmatpush1.msra.mxu0 0.0
        %431 = vmatprep.subr.mxu0 0.0
        %432 = vmatpush1.msra.mxu0 0.0
        %433 = vmatprep.subr.mxu0 0.0
        %434 = vmatpush1.msra.mxu0 0.0
        %435 = vmatprep.subr.mxu0 0.0
        %436 = vmatpush1.msra.mxu0 0.0
        %437 = vmatprep.subr.mxu0 0.0
        %438 = vmatpush1.msra.mxu0 0.0
        %439 = vmatprep.subr.mxu0 0.0
        %440 = vmatpush1.msra.mxu0 0.0
        %441 = vmatprep.subr.mxu0 0.0
        %442 = vmatpush1.msra.mxu0 0.0
        %443 = vmatprep.mubr.f32.mxu0 0.0
        %444 = vmatmul.mubr.f32.gmra.mrb[0].mxu0 %v368
        %v445 = vpop.f32.mrb[0].mxu0
        %v446 = vadd.f32 %v349, %v445
        %v447 = vpop.f32.mrb[0].mxu0
        %448 = vmatprep.mubr.f32.mxu0 0.0
        %449 = vmatmul.mubr.f32.gmra.mrb[0].mxu0 %v371
        %v450 = vpop.f32.mrb[0].mxu0
        %v451 = vadd.f32 %v354, %v450
        %v452 = vpop.f32.mrb[0].mxu0
        %453 = vmatprep.mubr.f32.mxu0 0.0
        %454 = vmatmul.mubr.f32.gmra.mrb[0].mxu0 %v374
        %v455 = vpop.f32.mrb[0].mxu0
        %v456 = vadd.f32 %v359, %v455
        %v457 = vpop.f32.mrb[0].mxu0
        %458 = vmatprep.mubr.f32.mxu0 0.0
        %459 = vmatmul.mubr.f32.gmra.mrb[0].mxu0 %v377
        %v460 = vpop.f32.mrb[0].mxu0
        %v461 = vadd.f32 %v364, %v460
        %v462 = vpop.f32.mrb[0].mxu0
        %463 = vdwg.mxu0
        %v464 = vtanh.pop %v446
        %v465 = vtanh.pop %v451
        %v466 = vtanh.pop %v456
        %v467 = vtanh.pop %v461
        %s468 = scalar_lea.vmem %s3, 32
        %v469 = vld [vmem:[%s468] sm:$0xff]
        %v470 = vld [vmem:[%s468 + $0x8] sm:$0xff]
        %v471 = vld [vmem:[%s468 + $0x10] sm:$0xff]
        %v472 = vld [vmem:[%s468 + $0x18] sm:$0xff]
        %s473 = scalar_lea.vmem %s4, 32
        %v474 = vld [vmem:[%s473] sm:$0xff]
        %v475 = vld [vmem:[%s473 + $0x8] sm:$0xff]
        %v476 = vld [vmem:[%s473 + $0x10] sm:$0xff]
        %v477 = vld [vmem:[%s473 + $0x18] sm:$0xff]
        %479 = vset.pattern.permute.xlu0 0
        %480 = vperm.xlu0 %479, %v474
        %v481 = vpop.permute.xlu0 %480
        %484 = vset.pattern.permute.xlu0 0
        %485 = vperm.xlu0 %484, %v475
        %v486 = vpop.permute.xlu0 %485
        %489 = vset.pattern.permute.xlu0 0
        %490 = vperm.xlu0 %489, %v476
        %v491 = vpop.permute.xlu0 %490
        %494 = vset.pattern.permute.xlu0 0
        %495 = vperm.xlu0 %494, %v477
        %v496 = vpop.permute.xlu0 %495
        %v499 = vsel %vm366, %v469, 0
        %v502 = vsel %vm366, %v470, 0
        %v505 = vsel %vm366, %v471, 0
        %v508 = vsel %vm366, %v472, 0
        %510 = vmatprep.subr.mxu0 0.0
        %511 = vmatpush1.msra.mxu0 %v464
        %512 = vmatprep.subr.mxu0 0.0
        %513 = vmatpush1.msra.mxu0 %v465
        %514 = vmatprep.subr.mxu0 0.0
        %515 = vmatpush1.msra.mxu0 %v466
        %516 = vmatprep.subr.mxu0 0.0
        %517 = vmatpush1.msra.mxu0 %v467
        %518 = vmatprep.subr.mxu0 0.0
        %519 = vmatpush1.msra.mxu0 0.0
        %520 = vmatprep.subr.mxu0 0.0
        %521 = vmatpush1.msra.mxu0 0.0
        %522 = vmatprep.subr.mxu0 0.0
        %523 = vmatpush1.msra.mxu0 0.0
        %524 = vmatprep.subr.mxu0 0.0
        %525 = vmatpush1.msra.mxu0 0.0
        %526 = vmatprep.subr.mxu0 0.0
        %527 = vmatpush1.msra.mxu0 0.0
        %528 = vmatprep.subr.mxu0 0.0
        %529 = vmatpush1.msra.mxu0 0.0
        %530 = vmatprep.subr.mxu0 0.0
        %531 = vmatpush1.msra.mxu0 0.0
        %532 = vmatprep.subr.mxu0 0.0
        %533 = vmatpush1.msra.mxu0 0.0
        %534 = vmatprep.subr.mxu0 0.0
        %535 = vmatpush1.msra.mxu0 0.0
        %536 = vmatprep.subr.mxu0 0.0
        %537 = vmatpush1.msra.mxu0 0.0
        %538 = vmatprep.subr.mxu0 0.0
        %539 = vmatpush1.msra.mxu0 0.0
        %540 = vmatprep.subr.mxu0 0.0
        %541 = vmatpush1.msra.mxu0 0.0
        %542 = vmatprep.subr.mxu0 0.0
        %543 = vmatpush1.msra.mxu0 0.0
        %544 = vmatprep.subr.mxu0 0.0
        %545 = vmatpush1.msra.mxu0 0.0
        %546 = vmatprep.subr.mxu0 0.0
        %547 = vmatpush1.msra.mxu0 0.0
        %548 = vmatprep.subr.mxu0 0.0
        %549 = vmatpush1.msra.mxu0 0.0
        %550 = vmatprep.subr.mxu0 0.0
        %551 = vmatpush1.msra.mxu0 0.0
        %552 = vmatprep.subr.mxu0 0.0
        %553 = vmatpush1.msra.mxu0 0.0
        %554 = vmatprep.subr.mxu0 0.0
        %555 = vmatpush1.msra.mxu0 0.0
        %556 = vmatprep.subr.mxu0 0.0
        %557 = vmatpush1.msra.mxu0 0.0
        %558 = vmatprep.subr.mxu0 0.0
        %559 = vmatpush1.msra.mxu0 0.0
        %560 = vmatprep.subr.mxu0 0.0
        %561 = vmatpush1.msra.mxu0 0.0
        %562 = vmatprep.subr.mxu0 0.0
        %563 = vmatpush1.msra.mxu0 0.0
        %564 = vmatprep.subr.mxu0 0.0
        %565 = vmatpush1.msra.mxu0 0.0
        %566 = vmatprep.subr.mxu0 0.0
        %567 = vmatpush1.msra.mxu0 0.0
        %568 = vmatprep.subr.mxu0 0.0
        %569 = vmatpush1.msra.mxu0 0.0
        %570 = vmatprep.subr.mxu0 0.0
        %571 = vmatpush1.msra.mxu0 0.0
        %572 = vmatprep.subr.mxu0 0.0
        %573 = vmatpush1.msra.mxu0 0.0
        %574 = vmatprep.mubr.f32.mxu0 0.0
        %575 = vmatmul.mubr.f32.gmra.mrb[0].mxu0 %v499
        %v576 = vpop.f32.mrb[0].mxu0
        %v577 = vadd.f32 %v481, %v576
        %v578 = vpop.f32.mrb[0].mxu0
        %579 = vmatprep.mubr.f32.mxu0 0.0
        %580 = vmatmul.mubr.f32.gmra.mrb[0].mxu0 %v502
        %v581 = vpop.f32.mrb[0].mxu0
        %v582 = vadd.f32 %v486, %v581
        %v583 = vpop.f32.mrb[0].mxu0
        %584 = vmatprep.mubr.f32.mxu0 0.0
        %585 = vmatmul.mubr.f32.gmra.mrb[0].mxu0 %v505
        %v586 = vpop.f32.mrb[0].mxu0
        %v587 = vadd.f32 %v491, %v586
        %v588 = vpop.f32.mrb[0].mxu0
        %589 = vmatprep.mubr.f32.mxu0 0.0
        %590 = vmatmul.mubr.f32.gmra.mrb[0].mxu0 %v508
        %v591 = vpop.f32.mrb[0].mxu0
        %v592 = vadd.f32 %v496, %v591
        %v593 = vpop.f32.mrb[0].mxu0
        %594 = vdwg.mxu0
        %v595 = vtanh.pop %v577
        %v596 = vtanh.pop %v582
        %v597 = vtanh.pop %v587
        %v598 = vtanh.pop %v592
        %v599 = vld [vmem:[%s5] sm:$0x3]
        %v600 = vld [vmem:[%s6] sm:$0x3]
        %602 = vset.pattern.permute.xlu0 0
        %603 = vperm.xlu0 %602, %v600
        %v604 = vpop.permute.xlu0 %603
        %v607 = vsel %vm366, %v599, 0
        %609 = vmatprep.subr.mxu0 0.0
        %610 = vmatpush1.msra.mxu0 %v595
        %611 = vmatprep.subr.mxu0 0.0
        %612 = vmatpush1.msra.mxu0 %v596
        %613 = vmatprep.subr.mxu0 0.0
        %614 = vmatpush1.msra.mxu0 %v597
        %615 = vmatprep.subr.mxu0 0.0
        %616 = vmatpush1.msra.mxu0 %v598
        %617 = vmatprep.subr.mxu0 0.0
        %618 = vmatpush1.msra.mxu0 0.0
        %619 = vmatprep.subr.mxu0 0.0
        %620 = vmatpush1.msra.mxu0 0.0
        %621 = vmatprep.subr.mxu0 0.0
        %622 = vmatpush1.msra.mxu0 0.0
        %623 = vmatprep.subr.mxu0 0.0
        %624 = vmatpush1.msra.mxu0 0.0
        %625 = vmatprep.subr.mxu0 0.0
        %626 = vmatpush1.msra.mxu0 0.0
        %627 = vmatprep.subr.mxu0 0.0
        %628 = vmatpush1.msra.mxu0 0.0
        %629 = vmatprep.subr.mxu0 0.0
        %630 = vmatpush1.msra.mxu0 0.0
        %631 = vmatprep.subr.mxu0 0.0
        %632 = vmatpush1.msra.mxu0 0.0
        %633 = vmatprep.subr.mxu0 0.0
        %634 = vmatpush1.msra.mxu0 0.0
        %635 = vmatprep.subr.mxu0 0.0
        %636 = vmatpush1.msra.mxu0 0.0
        %637 = vmatprep.subr.mxu0 0.0
        %638 = vmatpush1.msra.mxu0 0.0
        %639 = vmatprep.subr.mxu0 0.0
        %640 = vmatpush1.msra.mxu0 0.0
        %641 = vmatprep.subr.mxu0 0.0
        %642 = vmatpush1.msra.mxu0 0.0
        %643 = vmatprep.subr.mxu0 0.0
        %644 = vmatpush1.msra.mxu0 0.0
        %645 = vmatprep.subr.mxu0 0.0
        %646 = vmatpush1.msra.mxu0 0.0
        %647 = vmatprep.subr.mxu0 0.0
        %648 = vmatpush1.msra.mxu0 0.0
        %649 = vmatprep.subr.mxu0 0.0
        %650 = vmatpush1.msra.mxu0 0.0
        %651 = vmatprep.subr.mxu0 0.0
        %652 = vmatpush1.msra.mxu0 0.0
        %653 = vmatprep.subr.mxu0 0.0
        %654 = vmatpush1.msra.mxu0 0.0
        %655 = vmatprep.subr.mxu0 0.0
        %656 = vmatpush1.msra.mxu0 0.0
        %657 = vmatprep.subr.mxu0 0.0
        %658 = vmatpush1.msra.mxu0 0.0
        %659 = vmatprep.subr.mxu0 0.0
        %660 = vmatpush1.msra.mxu0 0.0
        %661 = vmatprep.subr.mxu0 0.0
        %662 = vmatpush1.msra.mxu0 0.0
        %663 = vmatprep.subr.mxu0 0.0
        %664 = vmatpush1.msra.mxu0 0.0
        %665 = vmatprep.subr.mxu0 0.0
        %666 = vmatpush1.msra.mxu0 0.0
        %667 = vmatprep.subr.mxu0 0.0
        %668 = vmatpush1.msra.mxu0 0.0
        %669 = vmatprep.subr.mxu0 0.0
        %670 = vmatpush1.msra.mxu0 0.0
        %671 = vmatprep.subr.mxu0 0.0
        %672 = vmatpush1.msra.mxu0 0.0
        %673 = vmatprep.mubr.f32.mxu0 0.0
        %674 = vmatmul.mubr.f32.gmra.mrb[0].mxu0 %v607
        %v675 = vpop.f32.mrb[0].mxu0
        %v676 = vadd.f32 %v604, %v675
        %v677 = vpop.f32.mrb[0].mxu0
        %678 = vdwg.mxu0
        %679 = vst [vmem:[%s267] sm:$0x3] %v676
        %s680 = sand.u32 %s181, 1
        %s681 = scalar_lea.sflag [#allocation3], %s680
        %s682 = sand.u32 %s181, 1
        %s683 = smul.addr %s682, 2
        %s684 = scalar_lea.vmem [#allocation2], %s683
        // Predicated region
        $region49: #{tpu_custom_call.1} parent=47 // pred_check
          %p685 = pneg %p191
        $region50: #{tpu_custom_call.1} parent=47 // pred_check_branch
          %687 = sbr.rel (%p685) target = $region52
        $region51: #{tpu_custom_call.1} parent=47 // pred_region
          %s689 = ssub.s32 32, 32
          %690 = vsyncadd %s681, %s689
          %s691 = smul.addr %s21, 32
          %s692 = scalar_lea.hbm %s7, %s691
          %s694 = sshll.u32 %s684, 4
          %s695 = int_to_ptr.vmem [resolvable:$true] %s694
          %697 = dma.vmem_to_hbm [thread:$0]  %s695, 32, %s692, %s681
        $region52: #{tpu_custom_call.1} parent=47 // pred_fallthru
          _
      $region48: #{tpu_custom_call.1} parent=5 // pred_fallthru
        _
      %p698 = scmp.le.s32.totalorder 2, %s16
      // Predicated region
      $region53: #{tpu_custom_call.1} parent=5 // pred_check
        %p699 = pneg %p698
      $region54: #{tpu_custom_call.1} parent=5 // pred_check_branch
        %701 = sbr.rel (%p699) target = $region56
      $region55: #{tpu_custom_call.1} parent=5 // pred_region
        %s702 = ssub.s32 %s16, 2
        // Predicated region
        $region57: #{tpu_custom_call.1} parent=55 // pred_check
          %p703 = pneg %p197
        $region58: #{tpu_custom_call.1} parent=55 // pred_check_branch
          %705 = sbr.rel (%p703) target = $region60
        $region59: #{tpu_custom_call.1} parent=55 // pred_region
          %s706 = sand.u32 %s182, 1
          %s707 = scalar_lea.sflag [#allocation3], %s706
          %s708 = sand.u32 %s182, 1
          %s709 = smul.addr %s708, 2
          %s710 = scalar_lea.vmem [#allocation2], %s709
          %711 = dma.done %s707, 32
        $region60: #{tpu_custom_call.1} parent=55 // pred_fallthru
          _
      $region56: #{tpu_custom_call.1} parent=5 // pred_fallthru
        _
    $region6: #{tpu_custom_call.1} parent=1 // loop_footer
      %s20 = sadd.s32 1, %s16
    $region7: #{tpu_custom_call.1} parent=1 // loop_footer_branch
      %15 = sbr.rel target = $region3
    $region8: #{tpu_custom_call.1} parent=1 // loop_exit
      _
    %712 = vsyncpa [#allocation3], 1
    %s713 = scalar_lea.sflag [#allocation3], 1
    %714 = vsyncpa %s713, 1

</llo_original>
